<compile_context>
chip_gen: v6e
topology: v6e:2x2x1
jax: 0.10.0
libtpu: 0.0.40
codegen_flags: <defaults>
</compile_context>

<pallas_src>
import functools

import jax
import jax.numpy as jnp
from jax.experimental import pallas as pl
from jax.experimental.pallas import tpu as pltpu


# ----------------------------------------------------------------------------
# Pallas kernels
# ----------------------------------------------------------------------------
def _patch_embed_ln_kernel(x_ref, w_ref, b_ref, g_ref, bt_ref, o_ref, *, eps):
    # x_ref: (tile, K) im2col patches; w_ref: (K, E); bias/gamma/beta: (1, E)
    x = x_ref[...].astype(jnp.float32)
    y = jnp.dot(x, w_ref[...], preferred_element_type=jnp.float32) + b_ref[...]
    # LayerNorm over the embedding dim (PyTorch: biased variance, eps inside sqrt)
    mu = jnp.mean(y, axis=-1, keepdims=True)
    yc = y - mu
    var = jnp.mean(yc * yc, axis=-1, keepdims=True)
    o_ref[...] = (yc * jax.lax.rsqrt(var + eps) * g_ref[...]
                  + bt_ref[...]).astype(o_ref.dtype)


def _patch_embed_kernel(x_ref, w_ref, b_ref, o_ref):
    # norm_layer=None specialization: conv-as-matmul + bias only.
    x = x_ref[...].astype(jnp.float32)
    y = jnp.dot(x, w_ref[...], preferred_element_type=jnp.float32) + b_ref[...]
    o_ref[...] = y.astype(o_ref.dtype)


# ----------------------------------------------------------------------------
# Wrapper
# ----------------------------------------------------------------------------
def _pick_row_tile(rows):
    # Biggest tile that divides the row count; at these sizes the whole
    # problem fits VMEM easily, so prefer one (or few) big grid steps.
    for t in (1024, 512, 256, 128, 64, 32, 16, 8):
        if rows % t == 0:
            return t
    return rows  # full-extent block is always legal


def patch_embed_forward(x, conv_w, conv_b, gamma=None, beta=None, *,
                        patch_size, eps=1e-5):
    """PatchEmbed.forward.

    x:       (B, C_in, H, W)  float32, NCHW (as in PyTorch)
    conv_w:  (E, C_in, p, p)  PyTorch Conv2d weight layout (OIHW)
    conv_b:  (E,)
    gamma/beta: (E,) LayerNorm affine params, or None for norm_layer=None
    returns: (B, Ho*Wo, E)
    """
    B, C_in, H, W = x.shape
    p = patch_size
    assert H % p == 0 and W % p == 0, "input size must match patch grid"
    E = conv_w.shape[0]
    K = C_in * p * p
    Ho, Wo = H // p, W // p
    R = B * Ho * Wo

    # im2col: rows ordered (b, ph, pw); features ordered (c, kh, kw) to match
    # the OIHW conv weight. Pure layout plumbing, done once in the wrapper.
    cols = (x.reshape(B, C_in, Ho, p, Wo, p)
             .transpose(0, 2, 4, 1, 3, 5)
             .reshape(R, K))
    w2d = conv_w.reshape(E, K).T  # (K, E)

    row_tile = _pick_row_tile(R)
    use_norm = gamma is not None

    base_in_specs = [
        pl.BlockSpec((row_tile, K), lambda i: (i, 0)),   # streaming token slab
        pl.BlockSpec((K, E), lambda i: (0, 0)),          # resident weight
        pl.BlockSpec((1, E), lambda i: (0, 0)),          # resident bias
    ]
    base_inputs = [cols, w2d, conv_b.reshape(1, E)]

    if use_norm:
        kern = functools.partial(_patch_embed_ln_kernel, eps=eps)
        in_specs = base_in_specs + [
            pl.BlockSpec((1, E), lambda i: (0, 0)),
            pl.BlockSpec((1, E), lambda i: (0, 0)),
        ]
        inputs = base_inputs + [gamma.reshape(1, E), beta.reshape(1, E)]
    else:
        kern = _patch_embed_kernel
        in_specs = base_in_specs
        inputs = base_inputs

    out = pl.pallas_call(
        kern,
        out_shape=jax.ShapeDtypeStruct((R, E), x.dtype),
        grid_spec=pltpu.PrefetchScalarGridSpec(
            num_scalar_prefetch=0,
            grid=(R // row_tile,),
            in_specs=in_specs,
            out_specs=pl.BlockSpec((row_tile, E), lambda i: (i, 0)),
        ),
        compiler_params=pltpu.CompilerParams(
            dimension_semantics=("parallel",)),  # independent tiles -> v7x 2-TC sharding
    )(*inputs)

    return out.reshape(B, Ho * Wo, E)


# ----------------------------------------------------------------------------
# Pure-JAX reference (lax conv + LN), for correctness checking only
# ----------------------------------------------------------------------------
def patch_embed_reference(x, conv_w, conv_b, gamma=None, beta=None, *,
                          patch_size, eps=1e-5):
    p = patch_size
    y = jax.lax.conv_general_dilated(
        x, conv_w, window_strides=(p, p), padding="VALID",
        dimension_numbers=("NCHW", "OIHW", "NCHW"))
    y = y + conv_b[None, :, None, None]
    B, E, Ho, Wo = y.shape
    y = y.reshape(B, E, Ho * Wo).transpose(0, 2, 1)  # (B, L, E)
    if gamma is not None:
        mu = jnp.mean(y, axis=-1, keepdims=True)
        var = jnp.mean((y - mu) ** 2, axis=-1, keepdims=True)
        y = (y - mu) / jnp.sqrt(var + eps) * gamma + beta
    return y


# ----------------------------------------------------------------------------
if __name__ == "__main__":
    # Small shapes consistent with the module: in_chans=3 (default), patch=4,
    # embed_dim=128 (lane-dense), 32x32 image -> 64 patches/image, B=2.
    B, C_in, H, W = 2, 3, 32, 32
    patch = 4
    embed_dim = 128

    key = jax.random.PRNGKey(0)
    k1, k2, k3, k4, k5 = jax.random.split(key, 5)
    x = jax.random.normal(k1, (B, C_in, H, W), jnp.float32)
    conv_w = 0.02 * jax.random.normal(k2, (embed_dim, C_in, patch, patch), jnp.float32)
    conv_b = 0.02 * jax.random.normal(k3, (embed_dim,), jnp.float32)
    gamma = 1.0 + 0.05 * jax.random.normal(k4, (embed_dim,), jnp.float32)
    beta = 0.05 * jax.random.normal(k5, (embed_dim,), jnp.float32)

    out = patch_embed_forward(x, conv_w, conv_b, gamma, beta,
                              patch_size=patch, eps=1e-5)
    out = jax.block_until_ready(out)

    ref = patch_embed_reference(x, conv_w, conv_b, gamma, beta,
                                patch_size=patch, eps=1e-5)
    ref = jax.block_until_ready(ref)

    assert out.shape == (B, (H // patch) * (W // patch), embed_dim)
    assert bool(jnp.all(jnp.isfinite(out)))
    assert bool(jnp.allclose(out, ref, atol=1e-4, rtol=1e-4)), \
        float(jnp.max(jnp.abs(out - ref)))

    # Also exercise the norm_layer=None specialization.
    out_nonorm = jax.block_until_ready(
        patch_embed_forward(x, conv_w, conv_b, None, None, patch_size=patch))
    ref_nonorm = patch_embed_reference(x, conv_w, conv_b, None, None,
                                       patch_size=patch)
    assert bool(jnp.allclose(out_nonorm, ref_nonorm, atol=1e-4, rtol=1e-4))

    print("KERNEL_OK")
</pallas_src>

<mosaic_0001>
module attributes {stable_mosaic.version = 11 : i64} {
  func.func @_patch_embed_ln_kernel(%arg0: i32, %arg1: memref<128x48xf32, #tpu.memory_space<vmem>>, %arg2: memref<48x128xf32, #tpu.memory_space<vmem>>, %arg3: memref<1x128xf32, #tpu.memory_space<vmem>>, %arg4: memref<1x128xf32, #tpu.memory_space<vmem>>, %arg5: memref<1x128xf32, #tpu.memory_space<vmem>>, %arg6: memref<128x128xf32, #tpu.memory_space<vmem>>) attributes {dimension_semantics = [#tpu.dimension_semantics<parallel>], iteration_bounds = array<i64: 1>, scalar_prefetch = 0 : i64, scratch_operands = 0 : i64, tpu.core_type = #tpu.core_type<tc>, window_params = [{transform_indices = @transform_0, window_bounds = array<i64: 128, 48>}, {pipeline_mode = #tpu.pipeline_mode<synchronous>, transform_indices = @transform_1, window_bounds = array<i64: 48, 128>}, {pipeline_mode = #tpu.pipeline_mode<synchronous>, transform_indices = @transform_2, window_bounds = array<i64: 1, 128>}, {pipeline_mode = #tpu.pipeline_mode<synchronous>, transform_indices = @transform_3, window_bounds = array<i64: 1, 128>}, {pipeline_mode = #tpu.pipeline_mode<synchronous>, transform_indices = @transform_4, window_bounds = array<i64: 1, 128>}, {transform_indices = @transform_5, window_bounds = array<i64: 128, 128>}]} {
    %c0 = arith.constant 0 : index
    %c0_0 = arith.constant 0 : index
    %0 = vector.load %arg1[%c0, %c0_0] : memref<128x48xf32, #tpu.memory_space<vmem>>, vector<128x48xf32>
    %c0_1 = arith.constant 0 : index
    %c0_2 = arith.constant 0 : index
    %1 = vector.load %arg2[%c0_1, %c0_2] : memref<48x128xf32, #tpu.memory_space<vmem>>, vector<48x128xf32>
    %cst = arith.constant dense<0.000000e+00> : vector<128x128xf32>
    %2 = tpu.matmul %0, %1, %cst {dimension_numbers = #tpu.dot_dimension_numbers<[1], [0], [0], [1], [0, 0, 1, 1], [], []>} : vector<128x48xf32>, vector<48x128xf32>, vector<128x128xf32> -> vector<128x128xf32>
    %c0_3 = arith.constant 0 : index
    %c0_4 = arith.constant 0 : index
    %3 = vector.load %arg3[%c0_3, %c0_4] : memref<1x128xf32, #tpu.memory_space<vmem>>, vector<1x128xf32>
    %4 = vector.broadcast %3 : vector<1x128xf32> to vector<128x128xf32>
    %5 = arith.addf %2, %4 : vector<128x128xf32>
    %cst_5 = arith.constant dense<0.000000e+00> : vector<128xf32>
    %6 = vector.multi_reduction <add>, %5, %cst_5 [1] : vector<128x128xf32> to vector<128xf32>
    %7 = vector.shape_cast %6 : vector<128xf32> to vector<128x1xf32>
    %cst_6 = arith.constant 1.280000e+02 : f32
    %8 = vector.broadcast %cst_6 : f32 to vector<128x1xf32>
    %9 = arith.divf %7, %8 : vector<128x1xf32>
    %10 = vector.broadcast %9 : vector<128x1xf32> to vector<128x128xf32>
    %11 = arith.subf %5, %10 : vector<128x128xf32>
    %12 = arith.mulf %11, %11 : vector<128x128xf32>
    %cst_7 = arith.constant dense<0.000000e+00> : vector<128xf32>
    %13 = vector.multi_reduction <add>, %12, %cst_7 [1] : vector<128x128xf32> to vector<128xf32>
    %14 = vector.shape_cast %13 : vector<128xf32> to vector<128x1xf32>
    %cst_8 = arith.constant 1.280000e+02 : f32
    %15 = vector.broadcast %cst_8 : f32 to vector<128x1xf32>
    %16 = arith.divf %14, %15 : vector<128x1xf32>
    %cst_9 = arith.constant 9.99999974E-6 : f32
    %17 = vector.broadcast %cst_9 : f32 to vector<128x1xf32>
    %18 = arith.addf %16, %17 : vector<128x1xf32>
    %19 = math.rsqrt %18 : vector<128x1xf32>
    %20 = vector.broadcast %19 : vector<128x1xf32> to vector<128x128xf32>
    %21 = arith.mulf %11, %20 : vector<128x128xf32>
    %c0_10 = arith.constant 0 : index
    %c0_11 = arith.constant 0 : index
    %22 = vector.load %arg4[%c0_10, %c0_11] : memref<1x128xf32, #tpu.memory_space<vmem>>, vector<1x128xf32>
    %23 = vector.broadcast %22 : vector<1x128xf32> to vector<128x128xf32>
    %24 = arith.mulf %21, %23 : vector<128x128xf32>
    %c0_12 = arith.constant 0 : index
    %c0_13 = arith.constant 0 : index
    %25 = vector.load %arg5[%c0_12, %c0_13] : memref<1x128xf32, #tpu.memory_space<vmem>>, vector<1x128xf32>
    %26 = vector.broadcast %25 : vector<1x128xf32> to vector<128x128xf32>
    %27 = arith.addf %24, %26 : vector<128x128xf32>
    %c0_14 = arith.constant 0 : index
    %c0_15 = arith.constant 0 : index
    %28 = vector.load %arg6[%c0_14, %c0_15] : memref<128x128xf32, #tpu.memory_space<vmem>>, vector<128x128xf32>
    tpu.vector_store %arg6[%c0_14, %c0_15], %27 {strides = array<i32>} : memref<128x128xf32, #tpu.memory_space<vmem>>, vector<128x128xf32>,
    return
  }
  func.func @transform_0(%arg0: i32) -> (i32, i32) {
    %c0_i32 = arith.constant 0 : i32
    %c0_i32_0 = arith.constant 0 : i32
    return %arg0, %c0_i32 : i32, i32
  }
  func.func @transform_1(%arg0: i32) -> (i32, i32) {
    %c0_i32 = arith.constant 0 : i32
    %c0_i32_0 = arith.constant 0 : i32
    %c0_i32_1 = arith.constant 0 : i32
    return %c0_i32, %c0_i32_0 : i32, i32
  }
  func.func @transform_2(%arg0: i32) -> (i32, i32) {
    %c0_i32 = arith.constant 0 : i32
    %c0_i32_0 = arith.constant 0 : i32
    %c0_i32_1 = arith.constant 0 : i32
    return %c0_i32, %c0_i32_0 : i32, i32
  }
  func.func @transform_3(%arg0: i32) -> (i32, i32) {
    %c0_i32 = arith.constant 0 : i32
    %c0_i32_0 = arith.constant 0 : i32
    %c0_i32_1 = arith.constant 0 : i32
    return %c0_i32, %c0_i32_0 : i32, i32
  }
  func.func @transform_4(%arg0: i32) -> (i32, i32) {
    %c0_i32 = arith.constant 0 : i32
    %c0_i32_0 = arith.constant 0 : i32
    %c0_i32_1 = arith.constant 0 : i32
    return %c0_i32, %c0_i32_0 : i32, i32
  }
  func.func @transform_5(%arg0: i32) -> (i32, i32) {
    %c0_i32 = arith.constant 0 : i32
    %c0_i32_0 = arith.constant 0 : i32
    return %arg0, %c0_i32 : i32, i32
  }
}

</mosaic_0001>

<llo_original>
// kernel: tpu_custom_call.1
$region0: #{tpu_custom_call.1}
  #allocation0 [shape = 'u32[]', space=smem, size = 0x4, offset = 0x4, fixed_abs, tag = 'smem constant byte address 0x4 - core index']
  #allocation1 [shape = 'u32[144,128]{1,0:T(1,128)}', space=vmem, size = 0x12000, scoped, tag = 'internal scratch']
  %s0 = inlined_call_operand.vmem [shape: f32[128,48], index: 0, kind: input, shape index: {}]
  %s1 = inlined_call_operand.vmem [shape: f32[48,128], index: 1, kind: input, shape index: {}]
  %s2 = inlined_call_operand.vmem [shape: f32[1,128], index: 2, kind: input, shape index: {}]
  %s3 = inlined_call_operand.vmem [shape: f32[1,128], index: 3, kind: input, shape index: {}]
  %s4 = inlined_call_operand.vmem [shape: f32[1,128], index: 4, kind: input, shape index: {}]
  %s5 = inlined_call_operand.hbm [shape: f32[128,128], index: 5, kind: output, shape index: {}]
  %s6 = sld [smem:[#allocation0]]
  $region30: #{tpu_custom_call.1} parent=0
    _
  %s8 = ssub.s32 1, %s6
  %s9 = scalar_select 0, %s8, %s6
  $region1: #{tpu_custom_call.1} parent=0
    #allocation2 [shape = 'u8[65536]{0}', space=vmem, size = 0x10000, scoped, tag = 'output window, operand 0, single buffered']
    #allocation3 [shape = 's32[1]{0}', space=sflag, size = 0x4, scoped, tag = 'scoped memory for tpu_custom_call.1']
    %10 = vsyncpa [#allocation3], 0
    // Predicated region
    $region2: #{tpu_custom_call.1} parent=1 // pred_check
      _
    $region3: #{tpu_custom_call.1} parent=1 // pred_check_branch
      %12 = sbr.rel (0) target = $region5
    $region4: #{tpu_custom_call.1} parent=1 // pred_region
      _
    $region5: #{tpu_custom_call.1} parent=1 // pred_fallthru
      _
    // Predicated region
    $region6: #{tpu_custom_call.1} parent=1 // pred_check
      _
    $region7: #{tpu_custom_call.1} parent=1 // pred_check_branch
      %14 = sbr.rel (0) target = $region9
    $region8: #{tpu_custom_call.1} parent=1 // pred_region
      _
    $region9: #{tpu_custom_call.1} parent=1 // pred_fallthru
      _
    // Predicated region
    $region10: #{tpu_custom_call.1} parent=1 // pred_check
      _
    $region11: #{tpu_custom_call.1} parent=1 // pred_check_branch
      %16 = sbr.rel (0) target = $region13
    $region12: #{tpu_custom_call.1} parent=1 // pred_region
      _
    $region13: #{tpu_custom_call.1} parent=1 // pred_fallthru
      _
    // Predicated region
    $region14: #{tpu_custom_call.1} parent=1 // pred_check
      _
    $region15: #{tpu_custom_call.1} parent=1 // pred_check_branch
      %18 = sbr.rel (0) target = $region17
    $region16: #{tpu_custom_call.1} parent=1 // pred_region
      _
    $region17: #{tpu_custom_call.1} parent=1 // pred_fallthru
      _
    // Predicated region
    $region18: #{tpu_custom_call.1} parent=1 // pred_check
      _
    $region19: #{tpu_custom_call.1} parent=1 // pred_check_branch
      %20 = sbr.rel (0) target = $region21
    $region20: #{tpu_custom_call.1} parent=1 // pred_region
      _
    $region21: #{tpu_custom_call.1} parent=1 // pred_fallthru
      _
    %v21 = vld [vmem:[%s0] sm:$0xff]
    %v22 = vld [vmem:[%s0 + $0x8] sm:$0xff]
    %v23 = vld [vmem:[%s0 + $0x10] sm:$0xff]
    %v24 = vld [vmem:[%s0 + $0x18] sm:$0xff]
    %v25 = vld [vmem:[%s0 + $0x20] sm:$0xff]
    %v26 = vld [vmem:[%s0 + $0x28] sm:$0xff]
    %v27 = vld [vmem:[%s0 + $0x30] sm:$0xff]
    %v28 = vld [vmem:[%s0 + $0x38] sm:$0xff]
    %v29 = vld [vmem:[%s0 + $0x40] sm:$0xff]
    %v30 = vld [vmem:[%s0 + $0x48] sm:$0xff]
    %v31 = vld [vmem:[%s0 + $0x50] sm:$0xff]
    %v32 = vld [vmem:[%s0 + $0x58] sm:$0xff]
    %v33 = vld [vmem:[%s0 + $0x60] sm:$0xff]
    %v34 = vld [vmem:[%s0 + $0x68] sm:$0xff]
    %v35 = vld [vmem:[%s0 + $0x70] sm:$0xff]
    %v36 = vld [vmem:[%s0 + $0x78] sm:$0xff]
    %v37 = vld [vmem:[%s1] sm:$0xff]
    %v38 = vld [vmem:[%s1 + $0x8] sm:$0xff]
    %v39 = vld [vmem:[%s1 + $0x10] sm:$0xff]
    %v40 = vld [vmem:[%s1 + $0x18] sm:$0xff]
    %v41 = vld [vmem:[%s1 + $0x20] sm:$0xff]
    %v42 = vld [vmem:[%s1 + $0x28] sm:$0xff]
    %v43 = vld [vmem:[%s2] sm:$0x1]
    %v45 = vlaneseq
    %v46 = vshrl.u32 %v45, 7
    %v47 = vsub.s32 0, %v46
    %v48 = vrot.slane %v43, %v47
    %vm50 = vcmask 392192
    %v52 = vsel %vm50, %v21, 0
    %v55 = vsel %vm50, %v22, 0
    %v58 = vsel %vm50, %v23, 0
    %v61 = vsel %vm50, %v24, 0
    %v64 = vsel %vm50, %v25, 0
    %v67 = vsel %vm50, %v26, 0
    %v70 = vsel %vm50, %v27, 0
    %v73 = vsel %vm50, %v28, 0
    %v76 = vsel %vm50, %v29, 0
    %v79 = vsel %vm50, %v30, 0
    %v82 = vsel %vm50, %v31, 0
    %v85 = vsel %vm50, %v32, 0
    %v88 = vsel %vm50, %v33, 0
    %v91 = vsel %vm50, %v34, 0
    %v94 = vsel %vm50, %v35, 0
    %v97 = vsel %vm50, %v36, 0
    %99 = vmatprep.subr.mxu0 0.0
    %100 = vmatpush1.msra.mxu0 0.0
    %101 = vmatprep.subr.mxu0 0.0
    %102 = vmatpush1.msra.mxu0 0.0
    %103 = vmatprep.subr.mxu0 0.0
    %104 = vmatpush1.msra.mxu0 0.0
    %105 = vmatprep.subr.mxu0 0.0
    %106 = vmatpush1.msra.mxu0 0.0
    %107 = vmatprep.subr.mxu0 0.0
    %108 = vmatpush1.msra.mxu0 0.0
    %109 = vmatprep.subr.mxu0 0.0
    %110 = vmatpush1.msra.mxu0 0.0
    %111 = vmatprep.subr.mxu0 0.0
    %112 = vmatpush1.msra.mxu0 0.0
    %113 = vmatprep.subr.mxu0 0.0
    %114 = vmatpush1.msra.mxu0 0.0
    %115 = vmatprep.subr.mxu0 0.0
    %116 = vmatpush1.msra.mxu0 0.0
    %117 = vmatprep.subr.mxu0 0.0
    %118 = vmatpush1.msra.mxu0 0.0
    %119 = vmatprep.subr.mxu0 0.0
    %120 = vmatpush1.msra.mxu0 %v42
    %121 = vmatprep.subr.mxu0 0.0
    %122 = vmatpush1.msra.mxu0 %v41
    %123 = vmatprep.subr.mxu0 0.0
    %124 = vmatpush1.msra.mxu0 %v40
    %125 = vmatprep.subr.mxu0 0.0
    %126 = vmatpush1.msra.mxu0 %v39
    %127 = vmatprep.subr.mxu0 0.0
    %128 = vmatpush1.msra.mxu0 %v38
    %129 = vmatprep.subr.mxu0 0.0
    %130 = vmatpush1.msra.mxu0 %v37
    %131 = vmatprep.subr.mxu0 0.0
    %132 = vmatpush2.msra.mxu0 0.0
    %133 = vmatprep.subr.mxu0 0.0
    %134 = vmatpush2.msra.mxu0 0.0
    %135 = vmatprep.subr.mxu0 0.0
    %136 = vmatpush2.msra.mxu0 0.0
    %137 = vmatprep.subr.mxu0 0.0
    %138 = vmatpush2.msra.mxu0 0.0
    %139 = vmatprep.subr.mxu0 0.0
    %140 = vmatpush2.msra.mxu0 0.0
    %141 = vmatprep.subr.mxu0 0.0
    %142 = vmatpush2.msra.mxu0 0.0
    %143 = vmatprep.subr.mxu0 0.0
    %144 = vmatpush2.msra.mxu0 0.0
    %145 = vmatprep.subr.mxu0 0.0
    %146 = vmatpush2.msra.mxu0 0.0
    %147 = vmatprep.subr.mxu0 0.0
    %148 = vmatpush2.msra.mxu0 0.0
    %149 = vmatprep.subr.mxu0 0.0
    %150 = vmatpush2.msra.mxu0 0.0
    %151 = vmatprep.subr.mxu0 0.0
    %152 = vmatpush2.msra.mxu0 0.0
    %153 = vmatprep.subr.mxu0 0.0
    %154 = vmatpush2.msra.mxu0 0.0
    %155 = vmatprep.subr.mxu0 0.0
    %156 = vmatpush2.msra.mxu0 0.0
    %157 = vmatprep.subr.mxu0 0.0
    %158 = vmatpush2.msra.mxu0 0.0
    %159 = vmatprep.subr.mxu0 0.0
    %160 = vmatpush2.msra.mxu0 0.0
    %161 = vmatprep.subr.mxu0 0.0
    %162 = vmatpush2.msra.mxu0 0.0
    %163 = vmatprep.mubr.f32.mxu0 0.0
    %164 = vmatmul.mubr.f32.gmra.mxu0 %v52
    %v165 = vpop.f32.mrf.mxu0
    %v166 = vadd.f32 %v48, %v165
    %v167 = vpop.f32.mrf.mxu0
    %168 = vmatprep.mubr.f32.mxu0 0.0
    %169 = vmatmul.mubr.f32.gmra.mxu0 %v55
    %v170 = vpop.f32.mrf.mxu0
    %v171 = vadd.f32 %v48, %v170
    %v172 = vpop.f32.mrf.mxu0
    %173 = vmatprep.mubr.f32.mxu0 0.0
    %174 = vmatmul.mubr.f32.gmra.mxu0 %v58
    %v175 = vpop.f32.mrf.mxu0
    %v176 = vadd.f32 %v48, %v175
    %v177 = vpop.f32.mrf.mxu0
    %178 = vmatprep.mubr.f32.mxu0 0.0
    %179 = vmatmul.mubr.f32.gmra.mxu0 %v61
    %v180 = vpop.f32.mrf.mxu0
    %v181 = vadd.f32 %v48, %v180
    %v182 = vpop.f32.mrf.mxu0
    %183 = vmatprep.mubr.f32.mxu0 0.0
    %184 = vmatmul.mubr.f32.gmra.mxu0 %v64
    %v185 = vpop.f32.mrf.mxu0
    %v186 = vadd.f32 %v48, %v185
    %v187 = vpop.f32.mrf.mxu0
    %188 = vmatprep.mubr.f32.mxu0 0.0
    %189 = vmatmul.mubr.f32.gmra.mxu0 %v67
    %v190 = vpop.f32.mrf.mxu0
    %v191 = vadd.f32 %v48, %v190
    %v192 = vpop.f32.mrf.mxu0
    %193 = vmatprep.mubr.f32.mxu0 0.0
    %194 = vmatmul.mubr.f32.gmra.mxu0 %v70
    %v195 = vpop.f32.mrf.mxu0
    %v196 = vadd.f32 %v48, %v195
    %v197 = vpop.f32.mrf.mxu0
    %198 = vmatprep.mubr.f32.mxu0 0.0
    %199 = vmatmul.mubr.f32.gmra.mxu0 %v73
    %v200 = vpop.f32.mrf.mxu0
    %v201 = vadd.f32 %v48, %v200
    %v202 = vpop.f32.mrf.mxu0
    %203 = vmatprep.mubr.f32.mxu0 0.0
    %204 = vmatmul.mubr.f32.gmra.mxu0 %v76
    %v205 = vpop.f32.mrf.mxu0
    %v206 = vadd.f32 %v48, %v205
    %v207 = vpop.f32.mrf.mxu0
    %208 = vmatprep.mubr.f32.mxu0 0.0
    %209 = vmatmul.mubr.f32.gmra.mxu0 %v79
    %v210 = vpop.f32.mrf.mxu0
    %v211 = vadd.f32 %v48, %v210
    %v212 = vpop.f32.mrf.mxu0
    %213 = vmatprep.mubr.f32.mxu0 0.0
    %214 = vmatmul.mubr.f32.gmra.mxu0 %v82
    %v215 = vpop.f32.mrf.mxu0
    %v216 = vadd.f32 %v48, %v215
    %v217 = vpop.f32.mrf.mxu0
    %218 = vmatprep.mubr.f32.mxu0 0.0
    %219 = vmatmul.mubr.f32.gmra.mxu0 %v85
    %v220 = vpop.f32.mrf.mxu0
    %v221 = vadd.f32 %v48, %v220
    %v222 = vpop.f32.mrf.mxu0
    %223 = vmatprep.mubr.f32.mxu0 0.0
    %224 = vmatmul.mubr.f32.gmra.mxu0 %v88
    %v225 = vpop.f32.mrf.mxu0
    %v226 = vadd.f32 %v48, %v225
    %v227 = vpop.f32.mrf.mxu0
    %228 = vmatprep.mubr.f32.mxu0 0.0
    %229 = vmatmul.mubr.f32.gmra.mxu0 %v91
    %v230 = vpop.f32.mrf.mxu0
    %v231 = vadd.f32 %v48, %v230
    %v232 = vpop.f32.mrf.mxu0
    %233 = vmatprep.mubr.f32.mxu0 0.0
    %234 = vmatmul.mubr.f32.gmra.mxu0 %v94
    %v235 = vpop.f32.mrf.mxu0
    %v236 = vadd.f32 %v48, %v235
    %v237 = vpop.f32.mrf.mxu0
    %238 = vmatprep.mubr.f32.mxu0 0.0
    %239 = vmatmul.mubr.f32.gmra.mxu0 %v97
    %v240 = vpop.f32.mrf.mxu0
    %v241 = vadd.f32 %v48, %v240
    %v242 = vpop.f32.mrf.mxu0
    %243 = vdwg.mxu0
    %244 = vadd.xlane.f32.xlu0 %v166
    %v245 = vpop.xlane.xlu0 %244
    %246 = vadd.xlane.f32.xlu0 %v171
    %v247 = vpop.xlane.xlu0 %246
    %248 = vadd.xlane.f32.xlu0 %v176
    %v249 = vpop.xlane.xlu0 %248
    %250 = vadd.xlane.f32.xlu0 %v181
    %v251 = vpop.xlane.xlu0 %250
    %252 = vadd.xlane.f32.xlu0 %v186
    %v253 = vpop.xlane.xlu0 %252
    %254 = vadd.xlane.f32.xlu0 %v191
    %v255 = vpop.xlane.xlu0 %254
    %256 = vadd.xlane.f32.xlu0 %v196
    %v257 = vpop.xlane.xlu0 %256
    %258 = vadd.xlane.f32.xlu0 %v201
    %v259 = vpop.xlane.xlu0 %258
    %260 = vadd.xlane.f32.xlu0 %v206
    %v261 = vpop.xlane.xlu0 %260
    %262 = vadd.xlane.f32.xlu0 %v211
    %v263 = vpop.xlane.xlu0 %262
    %264 = vadd.xlane.f32.xlu0 %v216
    %v265 = vpop.xlane.xlu0 %264
    %266 = vadd.xlane.f32.xlu0 %v221
    %v267 = vpop.xlane.xlu0 %266
    %268 = vadd.xlane.f32.xlu0 %v226
    %v269 = vpop.xlane.xlu0 %268
    %270 = vadd.xlane.f32.xlu0 %v231
    %v271 = vpop.xlane.xlu0 %270
    %272 = vadd.xlane.f32.xlu0 %v236
    %v273 = vpop.xlane.xlu0 %272
    %274 = vadd.xlane.f32.xlu0 %v241
    %v275 = vpop.xlane.xlu0 %274
    %v276 = vrcp.pop 128.0
    %v277 = vmul.f32 %v245, %v276
    %v278 = vmul.f32 %v247, %v276
    %v279 = vmul.f32 %v249, %v276
    %v280 = vmul.f32 %v251, %v276
    %v281 = vmul.f32 %v253, %v276
    %v282 = vmul.f32 %v255, %v276
    %v283 = vmul.f32 %v257, %v276
    %v284 = vmul.f32 %v259, %v276
    %v285 = vmul.f32 %v261, %v276
    %v286 = vmul.f32 %v263, %v276
    %v287 = vmul.f32 %v265, %v276
    %v288 = vmul.f32 %v267, %v276
    %v289 = vmul.f32 %v269, %v276
    %v290 = vmul.f32 %v271, %v276
    %v291 = vmul.f32 %v273, %v276
    %v292 = vmul.f32 %v275, %v276
    %v293 = vsub.f32 %v166, %v277
    %v294 = vsub.f32 %v171, %v278
    %v295 = vsub.f32 %v176, %v279
    %v296 = vsub.f32 %v181, %v280
    %v297 = vsub.f32 %v186, %v281
    %v298 = vsub.f32 %v191, %v282
    %v299 = vsub.f32 %v196, %v283
    %v300 = vsub.f32 %v201, %v284
    %v301 = vsub.f32 %v206, %v285
    %v302 = vsub.f32 %v211, %v286
    %v303 = vsub.f32 %v216, %v287
    %v304 = vsub.f32 %v221, %v288
    %v305 = vsub.f32 %v226, %v289
    %v306 = vsub.f32 %v231, %v290
    %v307 = vsub.f32 %v236, %v291
    %v308 = vsub.f32 %v241, %v292
    %v309 = vmul.f32 %v293, %v293
    %v310 = vmul.f32 %v294, %v294
    %v311 = vmul.f32 %v295, %v295
    %v312 = vmul.f32 %v296, %v296
    %v313 = vmul.f32 %v297, %v297
    %v314 = vmul.f32 %v298, %v298
    %v315 = vmul.f32 %v299, %v299
    %v316 = vmul.f32 %v300, %v300
    %v317 = vmul.f32 %v301, %v301
    %v318 = vmul.f32 %v302, %v302
    %v319 = vmul.f32 %v303, %v303
    %v320 = vmul.f32 %v304, %v304
    %v321 = vmul.f32 %v305, %v305
    %v322 = vmul.f32 %v306, %v306
    %v323 = vmul.f32 %v307, %v307
    %v324 = vmul.f32 %v308, %v308
    %325 = vadd.xlane.f32.xlu0 %v309
    %v326 = vpop.xlane.xlu0 %325
    %327 = vadd.xlane.f32.xlu0 %v310
    %v328 = vpop.xlane.xlu0 %327
    %329 = vadd.xlane.f32.xlu0 %v311
    %v330 = vpop.xlane.xlu0 %329
    %331 = vadd.xlane.f32.xlu0 %v312
    %v332 = vpop.xlane.xlu0 %331
    %333 = vadd.xlane.f32.xlu0 %v313
    %v334 = vpop.xlane.xlu0 %333
    %335 = vadd.xlane.f32.xlu0 %v314
    %v336 = vpop.xlane.xlu0 %335
    %337 = vadd.xlane.f32.xlu0 %v315
    %v338 = vpop.xlane.xlu0 %337
    %339 = vadd.xlane.f32.xlu0 %v316
    %v340 = vpop.xlane.xlu0 %339
    %341 = vadd.xlane.f32.xlu0 %v317
    %v342 = vpop.xlane.xlu0 %341
    %343 = vadd.xlane.f32.xlu0 %v318
    %v344 = vpop.xlane.xlu0 %343
    %345 = vadd.xlane.f32.xlu0 %v319
    %v346 = vpop.xlane.xlu0 %345
    %347 = vadd.xlane.f32.xlu0 %v320
    %v348 = vpop.xlane.xlu0 %347
    %349 = vadd.xlane.f32.xlu0 %v321
    %v350 = vpop.xlane.xlu0 %349
    %351 = vadd.xlane.f32.xlu0 %v322
    %v352 = vpop.xlane.xlu0 %351
    %353 = vadd.xlane.f32.xlu0 %v323
    %v354 = vpop.xlane.xlu0 %353
    %355 = vadd.xlane.f32.xlu0 %v324
    %v356 = vpop.xlane.xlu0 %355
    %v357 = vmul.f32 %v326, %v276
    %v358 = vmul.f32 %v328, %v276
    %v359 = vmul.f32 %v330, %v276
    %v360 = vmul.f32 %v332, %v276
    %v361 = vmul.f32 %v334, %v276
    %v362 = vmul.f32 %v336, %v276
    %v363 = vmul.f32 %v338, %v276
    %v364 = vmul.f32 %v340, %v276
    %v365 = vmul.f32 %v342, %v276
    %v366 = vmul.f32 %v344, %v276
    %v367 = vmul.f32 %v346, %v276
    %v368 = vmul.f32 %v348, %v276
    %v369 = vmul.f32 %v350, %v276
    %v370 = vmul.f32 %v352, %v276
    %v371 = vmul.f32 %v354, %v276
    %v372 = vmul.f32 %v356, %v276
    %v373 = vadd.f32 %v357, 1e-05
    %v374 = vadd.f32 %v358, 1e-05
    %v375 = vadd.f32 %v359, 1e-05
    %v376 = vadd.f32 %v360, 1e-05
    %v377 = vadd.f32 %v361, 1e-05
    %v378 = vadd.f32 %v362, 1e-05
    %v379 = vadd.f32 %v363, 1e-05
    %v380 = vadd.f32 %v364, 1e-05
    %v381 = vadd.f32 %v365, 1e-05
    %v382 = vadd.f32 %v366, 1e-05
    %v383 = vadd.f32 %v367, 1e-05
    %v384 = vadd.f32 %v368, 1e-05
    %v385 = vadd.f32 %v369, 1e-05
    %v386 = vadd.f32 %v370, 1e-05
    %v387 = vadd.f32 %v371, 1e-05
    %v388 = vadd.f32 %v372, 1e-05
    %v389 = vrsqrt.pop %v373
    %v390 = vrsqrt.pop %v374
    %v391 = vrsqrt.pop %v375
    %v392 = vrsqrt.pop %v376
    %v393 = vrsqrt.pop %v377
    %v394 = vrsqrt.pop %v378
    %v395 = vrsqrt.pop %v379
    %v396 = vrsqrt.pop %v380
    %v397 = vrsqrt.pop %v381
    %v398 = vrsqrt.pop %v382
    %v399 = vrsqrt.pop %v383
    %v400 = vrsqrt.pop %v384
    %v401 = vrsqrt.pop %v385
    %v402 = vrsqrt.pop %v386
    %v403 = vrsqrt.pop %v387
    %v404 = vrsqrt.pop %v388
    %v405 = vmul.f32 %v293, %v389
    %v406 = vmul.f32 %v294, %v390
    %v407 = vmul.f32 %v295, %v391
    %v408 = vmul.f32 %v296, %v392
    %v409 = vmul.f32 %v297, %v393
    %v410 = vmul.f32 %v298, %v394
    %v411 = vmul.f32 %v299, %v395
    %v412 = vmul.f32 %v300, %v396
    %v413 = vmul.f32 %v301, %v397
    %v414 = vmul.f32 %v302, %v398
    %v415 = vmul.f32 %v303, %v399
    %v416 = vmul.f32 %v304, %v400
    %v417 = vmul.f32 %v305, %v401
    %v418 = vmul.f32 %v306, %v402
    %v419 = vmul.f32 %v307, %v403
    %v420 = vmul.f32 %v308, %v404
    %v421 = vld [vmem:[%s3] sm:$0x1]
    %v423 = vlaneseq
    %v424 = vshrl.u32 %v423, 7
    %v425 = vsub.s32 0, %v424
    %v426 = vrot.slane %v421, %v425
    %v428 = vmul.f32 %v405, %v426
    %v429 = vmul.f32 %v406, %v426
    %v430 = vmul.f32 %v407, %v426
    %v431 = vmul.f32 %v408, %v426
    %v432 = vmul.f32 %v409, %v426
    %v433 = vmul.f32 %v410, %v426
    %v434 = vmul.f32 %v411, %v426
    %v435 = vmul.f32 %v412, %v426
    %v436 = vmul.f32 %v413, %v426
    %v437 = vmul.f32 %v414, %v426
    %v438 = vmul.f32 %v415, %v426
    %v439 = vmul.f32 %v416, %v426
    %v440 = vmul.f32 %v417, %v426
    %v441 = vmul.f32 %v418, %v426
    %v442 = vmul.f32 %v419, %v426
    %v443 = vmul.f32 %v420, %v426
    %v444 = vld [vmem:[%s4] sm:$0x1]
    %v446 = vlaneseq
    %v447 = vshrl.u32 %v446, 7
    %v448 = vsub.s32 0, %v447
    %v449 = vrot.slane %v444, %v448
    %v451 = vadd.f32 %v428, %v449
    %v452 = vadd.f32 %v429, %v449
    %v453 = vadd.f32 %v430, %v449
    %v454 = vadd.f32 %v431, %v449
    %v455 = vadd.f32 %v432, %v449
    %v456 = vadd.f32 %v433, %v449
    %v457 = vadd.f32 %v434, %v449
    %v458 = vadd.f32 %v435, %v449
    %v459 = vadd.f32 %v436, %v449
    %v460 = vadd.f32 %v437, %v449
    %v461 = vadd.f32 %v438, %v449
    %v462 = vadd.f32 %v439, %v449
    %v463 = vadd.f32 %v440, %v449
    %v464 = vadd.f32 %v441, %v449
    %v465 = vadd.f32 %v442, %v449
    %v466 = vadd.f32 %v443, %v449
    %467 = vst [vmem:[#allocation2] sm:$0xff] %v451
    %468 = vst [vmem:[#allocation2 + $0x8] sm:$0xff] %v452
    %469 = vst [vmem:[#allocation2 + $0x10] sm:$0xff] %v453
    %470 = vst [vmem:[#allocation2 + $0x18] sm:$0xff] %v454
    %471 = vst [vmem:[#allocation2 + $0x20] sm:$0xff] %v455
    %472 = vst [vmem:[#allocation2 + $0x28] sm:$0xff] %v456
    %473 = vst [vmem:[#allocation2 + $0x30] sm:$0xff] %v457
    %474 = vst [vmem:[#allocation2 + $0x38] sm:$0xff] %v458
    %475 = vst [vmem:[#allocation2 + $0x40] sm:$0xff] %v459
    %476 = vst [vmem:[#allocation2 + $0x48] sm:$0xff] %v460
    %477 = vst [vmem:[#allocation2 + $0x50] sm:$0xff] %v461
    %478 = vst [vmem:[#allocation2 + $0x58] sm:$0xff] %v462
    %479 = vst [vmem:[#allocation2 + $0x60] sm:$0xff] %v463
    %480 = vst [vmem:[#allocation2 + $0x68] sm:$0xff] %v464
    %481 = vst [vmem:[#allocation2 + $0x70] sm:$0xff] %v465
    %482 = vst [vmem:[#allocation2 + $0x78] sm:$0xff] %v466
    // Predicated region
    $region22: #{tpu_custom_call.1} parent=1 // pred_check
      _
    $region23: #{tpu_custom_call.1} parent=1 // pred_check_branch
      %484 = sbr.rel (0) target = $region25
    $region24: #{tpu_custom_call.1} parent=1 // pred_region
      %s486 = ssub.s32 2048, 2048
      %487 = vsyncadd [#allocation3], %s486
      %s488 = sshll.u32 [#allocation2], 4
      %s489 = int_to_ptr.vmem [resolvable:$true] %s488
      %494 = dma.vmem_to_hbm [thread:$0]  %s489, 2048, %s5, [#allocation3], 128, 128, 8
    $region25: #{tpu_custom_call.1} parent=1 // pred_fallthru
      _
    // Predicated region
    $region26: #{tpu_custom_call.1} parent=1 // pred_check
      _
    $region27: #{tpu_custom_call.1} parent=1 // pred_check_branch
      %496 = sbr.rel (0) target = $region29
    $region28: #{tpu_custom_call.1} parent=1 // pred_region
      %497 = dma.done [#allocation3], 2048
    $region29: #{tpu_custom_call.1} parent=1 // pred_fallthru
      _
    %498 = vsyncpa [#allocation3], 1

</llo_original>
